<compile_context>
chip_gen: v7x
topology: tpu7x:2x2x1
jax: 0.10.0
libtpu: 0.0.40
codegen_flags: <defaults>
</compile_context>

<pallas_src>
import jax
import jax.numpy as jnp
from jax import lax
from jax.experimental import pallas as pl
from jax.experimental.pallas import tpu as pltpu

_LANE = 128
_SUBLANE = 8


def _round_up(n, m):
    return ((n + m - 1) // m) * m


def _mean_t_kernel(x_ref, w_ref, b_ref, out_ref):
    # out[o, b] = sum_i W[o, i] * x[b, i] + bias[o]
    # Transposed (O, tb) block: batch on lanes -> dense vst, zero output padding.
    acc = lax.dot_general(
        w_ref[...], x_ref[...],
        dimension_numbers=(((1,), (1,)), ((), ())),   # contract both feature dims
        preferred_element_type=jnp.float32,
    )
    out_ref[...] = (acc + b_ref[...].astype(jnp.float32)).astype(out_ref.dtype)


def diag_gaussian(x, w, bias, logstd, *, tile_b=4096, xla_fallback_batch=1024):
    """DiagGaussian forward.

    x:      (B, num_inputs)
    w:      (num_outputs, num_inputs)   -- torch Linear layout
    bias:   (num_outputs,)
    logstd: (num_outputs,)

    Returns (mean, std):
      mean: (B, num_outputs)
      std:  (1, num_outputs)  -- broadcasts over batch inside the Normal; not
            materialized as (B, O) to avoid an HBM write the size of `mean`.
    """
    B, I = x.shape
    O = w.shape[0]

    # std has no data dependence on x -> computed outside the kernel, kept (1, O).
    std = jnp.exp(logstd.astype(jnp.float32)).reshape(1, O).astype(x.dtype)

    # Small-batch dispatch: XLA's fused dot beats a custom-call launch here.
    if B < xla_fallback_batch:
        mean = (jnp.dot(x, w.T, preferred_element_type=jnp.float32)
                + bias.astype(jnp.float32)[None, :]).astype(x.dtype)
        return mean, std

    # --- batch tile selection -------------------------------------------------
    if B <= 2 * _LANE:
        tb = B                       # single full-dim block (exempt from 8/128 rule)
    else:
        # lane-multiple tiles (dense stores) and >= 2 grid steps so v7x's two
        # TensorCores both get work; cap at tile_b to amortize per-step overhead.
        half = max(_LANE, ((B + 1) // 2) // _LANE * _LANE)
        tb = max(_LANE, min(tile_b, half) // _LANE * _LANE)
    grid = pl.cdiv(B, tb)            # partial last block: OOB rows are don't-care

    b_col = bias.reshape(O, 1)       # (O, 1) column for the (O, tb) accumulator

    itm = jnp.dtype(x.dtype).itemsize
    flops = 2 * B * I * O
    bytes_accessed = (B * I * itm
                      + O * I * jnp.dtype(w.dtype).itemsize
                      + O * jnp.dtype(bias.dtype).itemsize
                      + O * B * itm)

    # VMEM footprint (x/out double-buffered; tiles lane/sublane-padded in VMEM).
    lane = lambda n: _round_up(max(n, _LANE), _LANE)
    sub = lambda n: _round_up(max(n, _SUBLANE), _SUBLANE)
    vmem_est = (2 * sub(tb) * lane(I) * itm
                + 2 * sub(O) * lane(tb) * itm
                + sub(O) * lane(I) * jnp.dtype(w.dtype).itemsize
                + sub(O) * _LANE * jnp.dtype(bias.dtype).itemsize)
    cp_kwargs = dict(dimension_semantics=("parallel",))
    if vmem_est > 12 * 1024 * 1024:  # only needed past v5e's ~16 MiB scoped default
        cp_kwargs["vmem_limit_bytes"] = min(int(vmem_est * 3 // 2), 100 * 1024 * 1024)

    mean_t = pl.pallas_call(
        _mean_t_kernel,
        out_shape=jax.ShapeDtypeStruct((O, B), x.dtype),
        grid_spec=pltpu.PrefetchScalarGridSpec(
            num_scalar_prefetch=0,
            grid=(grid,),
            in_specs=[
                pl.BlockSpec((tb, I), lambda i: (i, 0)),   # x tile marches over B
                pl.BlockSpec((O, I), lambda i: (0, 0)),    # weight resident (no pad)
                pl.BlockSpec((O, 1), lambda i: (0, 0)),    # bias resident
            ],
            out_specs=pl.BlockSpec((O, tb), lambda i: (0, i)),
        ),
        compiler_params=pltpu.CompilerParams(**cp_kwargs),
        cost_estimate=pl.CostEstimate(
            flops=flops, transcendentals=0, bytes_accessed=bytes_accessed),
    )(x, w, b_col)

    # (O, B) -> (B, O): tiny compared with the padded writeback it replaces; a
    # transposed consumer could skip this entirely.
    mean = mean_t.T
    return mean, std


def _orthogonal(key, rows, cols, gain=1.0, dtype=jnp.float32):
    # Mirrors torch.nn.init.orthogonal_ (QR of a normal matrix + sign fix).
    flat = jax.random.normal(key, (max(rows, cols), min(rows, cols)), dtype=jnp.float32)
    q, r = jnp.linalg.qr(flat)
    q = q * jnp.sign(jnp.diagonal(r))
    if rows < cols:
        q = q.T
    return (gain * q[:rows, :cols]).astype(dtype)


if __name__ == "__main__":
    num_inputs, num_outputs = 32, 8
    batch = 8

    key = jax.random.PRNGKey(0)
    k_x, k_w, k_x2 = jax.random.split(key, 3)

    # Deterministic parameter init (matches module __init__ semantics):
    #   fc_mean.weight : orthogonal_(gain=1), shape (num_outputs, num_inputs)
    #   fc_mean.bias   : constant 0
    #   logstd bias    : zeros(num_outputs)
    w = _orthogonal(k_w, num_outputs, num_inputs)        # (O, I) torch Linear layout
    bias = jnp.zeros((num_outputs,), jnp.float32)
    logstd = jnp.zeros((num_outputs,), jnp.float32)

    x = jax.random.normal(k_x, (batch, num_inputs), jnp.float32)

    # Force the Pallas path even at this tiny demo batch (default dispatch would
    # route B < 1024 to the plain-XLA fallback).
    mean, std = diag_gaussian(x, w, bias, logstd, xla_fallback_batch=0)
    jax.block_until_ready((mean, std))

    # Reference check in plain JAX.
    ref_mean = x @ w.T + bias[None, :]
    ref_std = jnp.exp(logstd)[None, :]
    assert mean.shape == (batch, num_outputs) and std.shape == (1, num_outputs)
    assert jnp.allclose(mean, ref_mean, atol=1e-5), "mean mismatch"
    assert jnp.allclose(std, ref_std, atol=1e-6), "std mismatch"

    # Also exercise the tiled path with a partial last block (grid > 1, B % tb != 0).
    batch2 = 400
    x2 = jax.random.normal(k_x2, (batch2, num_inputs), jnp.float32)
    mean2, std2 = diag_gaussian(x2, w, bias, logstd, xla_fallback_batch=0)
    jax.block_until_ready((mean2, std2))
    ref_mean2 = x2 @ w.T + bias[None, :]
    assert mean2.shape == (batch2, num_outputs)
    assert jnp.allclose(mean2, ref_mean2, atol=1e-5), "tiled mean mismatch"

    # TODO(synk): torch.distributions.Normal object itself has no Pallas
    # equivalent; (mean, std) distribution parameters are returned instead.
    print("KERNEL_OK")
</pallas_src>

<mosaic_0001>
module attributes {stable_mosaic.version = 11 : i64} {
  func.func @_mean_t_kernel(%arg0: i32, %arg1: memref<8x32xf32, #tpu.memory_space<vmem>>, %arg2: memref<8x32xf32, #tpu.memory_space<vmem>>, %arg3: memref<8x1xf32, #tpu.memory_space<vmem>>, %arg4: memref<8x8xf32, #tpu.memory_space<vmem>>) attributes {dimension_semantics = [#tpu.dimension_semantics<parallel>], iteration_bounds = array<i64: 1>, scalar_prefetch = 0 : i64, scratch_operands = 0 : i64, tpu.core_type = #tpu.core_type<tc>, window_params = [{transform_indices = @transform_0, window_bounds = array<i64: 8, 32>}, {pipeline_mode = #tpu.pipeline_mode<synchronous>, transform_indices = @transform_1, window_bounds = array<i64: 8, 32>}, {pipeline_mode = #tpu.pipeline_mode<synchronous>, transform_indices = @transform_2, window_bounds = array<i64: 8, 1>}, {transform_indices = @transform_3, window_bounds = array<i64: 8, 8>}]} {
    %c0 = arith.constant 0 : index
    %c0_0 = arith.constant 0 : index
    %0 = vector.load %arg2[%c0, %c0_0] : memref<8x32xf32, #tpu.memory_space<vmem>>, vector<8x32xf32>
    %c0_1 = arith.constant 0 : index
    %c0_2 = arith.constant 0 : index
    %1 = vector.load %arg1[%c0_1, %c0_2] : memref<8x32xf32, #tpu.memory_space<vmem>>, vector<8x32xf32>
    %cst = arith.constant dense<0.000000e+00> : vector<8x8xf32>
    %2 = tpu.matmul %0, %1, %cst {dimension_numbers = #tpu.dot_dimension_numbers<[1], [1], [0], [0], [0, 0, 1, 0], [], []>} : vector<8x32xf32>, vector<8x32xf32>, vector<8x8xf32> -> vector<8x8xf32>
    %c0_3 = arith.constant 0 : index
    %c0_4 = arith.constant 0 : index
    %3 = vector.load %arg3[%c0_3, %c0_4] : memref<8x1xf32, #tpu.memory_space<vmem>>, vector<8x1xf32>
    %4 = vector.broadcast %3 : vector<8x1xf32> to vector<8x8xf32>
    %5 = arith.addf %2, %4 : vector<8x8xf32>
    %c0_5 = arith.constant 0 : index
    %c0_6 = arith.constant 0 : index
    %6 = vector.load %arg4[%c0_5, %c0_6] : memref<8x8xf32, #tpu.memory_space<vmem>>, vector<8x8xf32>
    tpu.vector_store %arg4[%c0_5, %c0_6], %5 {strides = array<i32>} : memref<8x8xf32, #tpu.memory_space<vmem>>, vector<8x8xf32>,
    return
  }
  func.func @transform_0(%arg0: i32) -> (i32, i32) {
    %c0_i32 = arith.constant 0 : i32
    %c0_i32_0 = arith.constant 0 : i32
    return %arg0, %c0_i32 : i32, i32
  }
  func.func @transform_1(%arg0: i32) -> (i32, i32) {
    %c0_i32 = arith.constant 0 : i32
    %c0_i32_0 = arith.constant 0 : i32
    %c0_i32_1 = arith.constant 0 : i32
    return %c0_i32, %c0_i32_0 : i32, i32
  }
  func.func @transform_2(%arg0: i32) -> (i32, i32) {
    %c0_i32 = arith.constant 0 : i32
    %c0_i32_0 = arith.constant 0 : i32
    %c0_i32_1 = arith.constant 0 : i32
    return %c0_i32, %c0_i32_0 : i32, i32
  }
  func.func @transform_3(%arg0: i32) -> (i32, i32) {
    %c0_i32 = arith.constant 0 : i32
    %c0_i32_0 = arith.constant 0 : i32
    return %c0_i32, %arg0 : i32, i32
  }
}

</mosaic_0001>

<llo_original>
// kernel: tpu_custom_call.1
$region0: #{tpu_custom_call.1}
  #allocation0 [shape = 'u32[]', space=smem, size = 0x4, offset = 0x4, fixed_abs, tag = 'smem constant byte address 0x4 - core index']
  #allocation1 [shape = 'u32[144,128]{1,0:T(1,128)}', space=vmem, size = 0x12000, scoped, tag = 'internal scratch']
  %s0 = inlined_call_operand.vmem [shape: f32[8,32], index: 0, kind: input, shape index: {}]
  %s1 = inlined_call_operand.hbm [shape: f32[8,32], index: 1, kind: input, shape index: {}]
  %s2 = inlined_call_operand.vmem [shape: f32[8,1], index: 2, kind: input, shape index: {}]
  %s3 = inlined_call_operand.hbm [shape: f32[8,8], index: 3, kind: output, shape index: {}]
  %s4 = sld [smem:[#allocation0]]
  $region26: #{tpu_custom_call.1} parent=0
    _
  %s6 = ssub.s32 1, %s4
  %s7 = scalar_select 0, %s6, %s4
  $region1: #{tpu_custom_call.1} parent=0
    #allocation2 [shape = 'u8[4096]{0}', space=vmem, size = 0x1000, scoped, tag = 'input window, operand 1, single buffered']
    #allocation3 [shape = 's32[1]{0}', space=sflag, size = 0x4, scoped, tag = 'scoped memory for tpu_custom_call.1']
    #allocation4 [shape = 's32[1]{0}', space=sflag, size = 0x4, scoped, tag = 'scoped memory for tpu_custom_call.1']
    #allocation5 [shape = 'u8[4096]{0}', space=vmem, size = 0x1000, scoped, tag = 'output window, operand 0, single buffered']
    %8 = vsyncpa [#allocation3], 0
    %9 = vsyncpa [#allocation4], 0
    // Predicated region
    $region2: #{tpu_custom_call.1} parent=1 // pred_check
      _
    $region3: #{tpu_custom_call.1} parent=1 // pred_check_branch
      %11 = sbr.rel (0) target = $region5
    $region4: #{tpu_custom_call.1} parent=1 // pred_region
      _
    $region5: #{tpu_custom_call.1} parent=1 // pred_fallthru
      _
    // Predicated region
    $region6: #{tpu_custom_call.1} parent=1 // pred_check
      _
    $region7: #{tpu_custom_call.1} parent=1 // pred_check_branch
      %13 = sbr.rel (0) target = $region9
    $region8: #{tpu_custom_call.1} parent=1 // pred_region
      %s15 = ssub.s32 128, 128
      %16 = vsyncadd [#allocation3], %s15
      %s18 = sshll.u32 [#allocation2], 4
      %s19 = int_to_ptr.vmem [resolvable:$true] %s18
      %21 = dma.hbm_to_vmem [thread:$0]  %s1, 128, %s19, [#allocation3]
    $region9: #{tpu_custom_call.1} parent=1 // pred_fallthru
      _
    // Predicated region
    $region10: #{tpu_custom_call.1} parent=1 // pred_check
      _
    $region11: #{tpu_custom_call.1} parent=1 // pred_check_branch
      %23 = sbr.rel (0) target = $region13
    $region12: #{tpu_custom_call.1} parent=1 // pred_region
      _
    $region13: #{tpu_custom_call.1} parent=1 // pred_fallthru
      _
    // Predicated region
    $region14: #{tpu_custom_call.1} parent=1 // pred_check
      _
    $region15: #{tpu_custom_call.1} parent=1 // pred_check_branch
      %25 = sbr.rel (0) target = $region17
    $region16: #{tpu_custom_call.1} parent=1 // pred_region
      %26 = dma.done [#allocation3], 128
    $region17: #{tpu_custom_call.1} parent=1 // pred_fallthru
      _
    %v27 = vld [vmem:[#allocation2] sm:$0xff]
    %v28 = vld [vmem:[%s0] sm:$0xff]
    %v29 = vld [vmem:[%s2] sm:$0xff]
    %31 = vset.pattern.permute.xlu0 0
    %32 = vperm.xlu0 %31, %v29
    %v33 = vpop.permute.xlu0 %32
    %vm35 = vcmask 261120
    %v37 = vsel %vm35, %v27, 0
    %v40 = vsel %vm35, %v28, 0
    %42 = vmatprep.subr.mxu0 0.0
    %43 = vmatpush1.xpose.msra.mxu0 %v40
    %44 = vmatprep.subr.mxu0 0.0
    %45 = vmatpush1.xpose.msra.mxu0 0.0
    %46 = vmatprep.subr.mxu0 0.0
    %47 = vmatpush1.xpose.msra.mxu0 0.0
    %48 = vmatprep.subr.mxu0 0.0
    %49 = vmatpush1.xpose.msra.mxu0 0.0
    %50 = vmatprep.subr.mxu0 0.0
    %51 = vmatpush1.xpose.msra.mxu0 0.0
    %52 = vmatprep.subr.mxu0 0.0
    %53 = vmatpush1.xpose.msra.mxu0 0.0
    %54 = vmatprep.subr.mxu0 0.0
    %55 = vmatpush1.xpose.msra.mxu0 0.0
    %56 = vmatprep.subr.mxu0 0.0
    %57 = vmatpush1.xpose.msra.mxu0 0.0
    %58 = vmatprep.subr.mxu0 0.0
    %59 = vmatpush1.xpose.msra.mxu0 0.0
    %60 = vmatprep.subr.mxu0 0.0
    %61 = vmatpush1.xpose.msra.mxu0 0.0
    %62 = vmatprep.subr.mxu0 0.0
    %63 = vmatpush1.xpose.msra.mxu0 0.0
    %64 = vmatprep.subr.mxu0 0.0
    %65 = vmatpush1.xpose.msra.mxu0 0.0
    %66 = vmatprep.subr.mxu0 0.0
    %67 = vmatpush1.xpose.msra.mxu0 0.0
    %68 = vmatprep.subr.mxu0 0.0
    %69 = vmatpush1.xpose.msra.mxu0 0.0
    %70 = vmatprep.subr.mxu0 0.0
    %71 = vmatpush1.xpose.msra.mxu0 0.0
    %72 = vmatprep.subr.mxu0 0.0
    %73 = vmatpush1.xpose.msra.mxu0 0.0
    %74 = vmatprep.subr.mxu0 0.0
    %75 = vmatpush1.xpose.msra.mxu0 0.0
    %76 = vmatprep.subr.mxu0 0.0
    %77 = vmatpush1.xpose.msra.mxu0 0.0
    %78 = vmatprep.subr.mxu0 0.0
    %79 = vmatpush1.xpose.msra.mxu0 0.0
    %80 = vmatprep.subr.mxu0 0.0
    %81 = vmatpush1.xpose.msra.mxu0 0.0
    %82 = vmatprep.subr.mxu0 0.0
    %83 = vmatpush1.xpose.msra.mxu0 0.0
    %84 = vmatprep.subr.mxu0 0.0
    %85 = vmatpush1.xpose.msra.mxu0 0.0
    %86 = vmatprep.subr.mxu0 0.0
    %87 = vmatpush1.xpose.msra.mxu0 0.0
    %88 = vmatprep.subr.mxu0 0.0
    %89 = vmatpush1.xpose.msra.mxu0 0.0
    %90 = vmatprep.subr.mxu0 0.0
    %91 = vmatpush1.xpose.msra.mxu0 0.0
    %92 = vmatprep.subr.mxu0 0.0
    %93 = vmatpush1.xpose.msra.mxu0 0.0
    %94 = vmatprep.subr.mxu0 0.0
    %95 = vmatpush1.xpose.msra.mxu0 0.0
    %96 = vmatprep.subr.mxu0 0.0
    %97 = vmatpush1.xpose.msra.mxu0 0.0
    %98 = vmatprep.subr.mxu0 0.0
    %99 = vmatpush1.xpose.msra.mxu0 0.0
    %100 = vmatprep.subr.mxu0 0.0
    %101 = vmatpush1.xpose.msra.mxu0 0.0
    %102 = vmatprep.subr.mxu0 0.0
    %103 = vmatpush1.xpose.msra.mxu0 0.0
    %104 = vmatprep.subr.mxu0 0.0
    %105 = vmatpush1.xpose.msra.mxu0 0.0
    %106 = vmatprep.mubr.f32.mxu0 0.0
    %107 = vmatmul.mubr.f32.gmra.mrb[0].mxu0 %v37
    %v108 = vpop.f32.mrb[0].mxu0
    %v109 = vadd.f32 %v33, %v108
    %v110 = vpop.f32.mrb[0].mxu0
    %111 = vdwg.mxu0
    %vm112 = vcmask 64512
    %113 = vst.msk [vmem:[#allocation5] sm:$0xff] %vm112, %v109
    // Predicated region
    $region18: #{tpu_custom_call.1} parent=1 // pred_check
      _
    $region19: #{tpu_custom_call.1} parent=1 // pred_check_branch
      %115 = sbr.rel (0) target = $region21
    $region20: #{tpu_custom_call.1} parent=1 // pred_region
      %s117 = ssub.s32 128, 128
      %118 = vsyncadd [#allocation4], %s117
      %s120 = sshll.u32 [#allocation5], 4
      %s121 = int_to_ptr.vmem [resolvable:$true] %s120
      %123 = dma.vmem_to_hbm [thread:$0]  %s121, 128, %s3, [#allocation4]
    $region21: #{tpu_custom_call.1} parent=1 // pred_fallthru
      _
    // Predicated region
    $region22: #{tpu_custom_call.1} parent=1 // pred_check
      _
    $region23: #{tpu_custom_call.1} parent=1 // pred_check_branch
      %125 = sbr.rel (0) target = $region25
    $region24: #{tpu_custom_call.1} parent=1 // pred_region
      %126 = dma.done [#allocation4], 128
    $region25: #{tpu_custom_call.1} parent=1 // pred_fallthru
      _
    %127 = vsyncpa [#allocation3], 1
    %128 = vsyncpa [#allocation4], 1

</llo_original>
